<compile_context>
chip_gen: v5e
topology: v5e:2x2
jax: 0.10.0
libtpu: 0.0.40
codegen_flags: <defaults>
</compile_context>

<pallas_src>
import functools

import numpy as np

import jax
import jax.numpy as jnp
from jax.experimental import pallas as pl
from jax.experimental.pallas import tpu as pltpu


def state_encoder_kernel(x_ref, w1_ref, b1_ref, w2_ref, b2_ref, out_ref, *,
                         compute_dtype):
    # x_ref : (TB, D_in)  tile of the state batch, in its original HBM dtype
    # w1_ref: (D_in, H)   w2_ref: (H, O)   in compute_dtype (VMEM-resident)
    # b1_ref: (1, H)      b2_ref: (1, O)   f32 (bias-add / ReLU stay f32 on VPU)
    # out_ref: (TB, O)    output dtype (f32 or bf16), last dim == full array dim
    x = x_ref[...].astype(compute_dtype)          # in-kernel cast, hidden under DMA
    h = jnp.dot(x, w1_ref[...], preferred_element_type=jnp.float32) + b1_ref[...]
    h = jnp.maximum(h, 0.0)                       # ReLU in f32
    h = h.astype(w2_ref.dtype)                    # narrow operands on the 2nd MXU pass
    o = jnp.dot(h, w2_ref[...], preferred_element_type=jnp.float32) + b2_ref[...]
    out_ref[...] = o.astype(out_ref.dtype)


def _round_up(n, m):
    return ((n + m - 1) // m) * m


def state_encoder_forward(state, w1, b1, w2, b2, *, tile_b=2048,
                          compute_dtype=None, out_dtype=None,
                          vmem_limit_bytes=None):
    """state: (B, D_in). Weights (in, out). Returns (B, O).

    compute_dtype: dtype for x / W1 / W2 MXU operands (e.g. jnp.bfloat16 on any
      generation — accumulation and bias/ReLU stay in float32 regardless).
    out_dtype: output dtype (default: state.dtype). Use jnp.bfloat16 when the
      downstream consumer accepts it — output writeback is the dominant HBM stream.
    tile_b: batch rows per grid step. 1-2K is enough on v5e; 2-4K on v6e;
      4-8K on v7x (pass vmem_limit_bytes if you push past the 32 MiB scoped default).
    """
    B, D_in = state.shape
    H = w1.shape[1]
    O = w2.shape[1]

    compute_dtype = jnp.dtype(compute_dtype if compute_dtype is not None
                              else state.dtype)
    out_dtype = jnp.dtype(out_dtype if out_dtype is not None else state.dtype)

    # Weights are tiny (D_in*H + H*O elements): cast once in the wrapper.
    # Biases stay f32 so the bias-add / ReLU run in f32 on the VPU.
    w1c = w1.astype(compute_dtype)
    w2c = w2.astype(compute_dtype)
    b1c = b1.astype(jnp.float32).reshape(1, H)
    b2c = b2.astype(jnp.float32).reshape(1, O)

    # Tile selection. No batch padding: grid = cdiv(B, tile); Pallas masks the
    # overhanging last block's stores. A tile smaller than B must be a multiple
    # of 8 (sublane rule); a tile equal to B is always legal.
    sub = 8
    tile_b = max(sub, int(tile_b))
    if B > tile_b:
        tile_b_eff = max(sub, (tile_b // sub) * sub)
    elif B >= 1024:
        # Large single-tile batch: split into >=2 steps so the "parallel" batch
        # axis can be sharded across TensorCores (v7x megacore).
        tile_b_eff = _round_up(pl.cdiv(B, 2), sub)
    else:
        tile_b_eff = B
    grid = (pl.cdiv(B, tile_b_eff),)

    flops = 2 * B * (D_in * H + H * O)
    bytes_accessed = (
        B * D_in * state.dtype.itemsize           # streamed input
        + (D_in * H + H * O) * compute_dtype.itemsize
        + (H + O) * 4                             # biases (f32)
        + B * O * out_dtype.itemsize              # output writeback
    )

    compiler_params = pltpu.CompilerParams(
        dimension_semantics=("parallel",),        # batch axis shardable across TCs
        vmem_limit_bytes=vmem_limit_bytes,
    )

    out = pl.pallas_call(
        functools.partial(state_encoder_kernel, compute_dtype=compute_dtype),
        out_shape=jax.ShapeDtypeStruct((B, O), out_dtype),
        grid_spec=pltpu.PrefetchScalarGridSpec(
            num_scalar_prefetch=0,
            grid=grid,
            in_specs=[
                pl.BlockSpec((tile_b_eff, D_in), lambda i: (i, 0)),  # streamed state tile
                # Constant (0, 0) index_maps => weights/biases stay VMEM-resident.
                pl.BlockSpec((D_in, H), lambda i: (0, 0)),           # W1
                pl.BlockSpec((1, H), lambda i: (0, 0)),              # b1
                pl.BlockSpec((H, O), lambda i: (0, 0)),              # W2
                pl.BlockSpec((1, O), lambda i: (0, 0)),              # b2
            ],
            # Last dim == full array dim (O), so no 128-pad and no wrapper slice.
            out_specs=pl.BlockSpec((tile_b_eff, O), lambda i: (i, 0)),
        ),
        compiler_params=compiler_params,
        cost_estimate=pl.CostEstimate(
            flops=flops, transcendentals=0, bytes_accessed=bytes_accessed
        ),
    )(state, w1c, b1c, w2c, b2c)

    return out


def init_params(key, d_in, hidden, out):
    """Deterministic PyTorch-style uniform(-1/sqrt(fan_in), 1/sqrt(fan_in)) init."""
    k1, k2, k3, k4 = jax.random.split(key, 4)
    lim1 = 1.0 / jnp.sqrt(jnp.float32(d_in))
    lim2 = 1.0 / jnp.sqrt(jnp.float32(hidden))
    w1 = jax.random.uniform(k1, (d_in, hidden), jnp.float32, -lim1, lim1)
    b1 = jax.random.uniform(k2, (1, hidden), jnp.float32, -lim1, lim1)
    w2 = jax.random.uniform(k3, (hidden, out), jnp.float32, -lim2, lim2)
    b2 = jax.random.uniform(k4, (1, out), jnp.float32, -lim2, lim2)
    return w1, b1, w2, b2


if __name__ == "__main__":
    # Small, deterministic example consistent with the module:
    #   observations = {'full_state': (B, D_in)} ; state_mlp_size = (64, 64)
    B, D_IN, HIDDEN, OUT = 16, 32, 64, 64

    key = jax.random.PRNGKey(0)
    k_state, k_params, k_state2 = jax.random.split(key, 3)
    observations = {"full_state": jax.random.normal(k_state, (B, D_IN), jnp.float32)}
    w1, b1, w2, b2 = init_params(k_params, D_IN, HIDDEN, OUT)

    x = observations["full_state"]
    ref = jnp.maximum(x @ w1 + b1, 0.0) @ w2 + b2  # pure-JAX forward reference

    # f32 operand / f32 output path (default — matches the PyTorch module).
    state_feat = jax.block_until_ready(state_encoder_forward(x, w1, b1, w2, b2))
    assert state_feat.shape == (B, OUT)
    assert state_feat.dtype == jnp.float32
    assert jnp.allclose(state_feat, ref, atol=1e-5, rtol=1e-5)

    # bf16 operand + bf16 output path (halves dominant HBM traffic; fine on all gens).
    state_feat_bf16 = jax.block_until_ready(
        state_encoder_forward(x, w1, b1, w2, b2,
                              compute_dtype=jnp.bfloat16, out_dtype=jnp.bfloat16)
    )
    assert state_feat_bf16.shape == (B, OUT)
    assert state_feat_bf16.dtype == jnp.bfloat16
    assert jnp.allclose(state_feat_bf16.astype(jnp.float32), ref, atol=3e-2, rtol=3e-2)

    # Multi-step grid with an overhanging last block (B not a multiple of the tile):
    # exercises cdiv grid + masked boundary stores (no wrapper-side padding).
    B2 = 40
    x2 = jax.random.normal(k_state2, (B2, D_IN), jnp.float32)
    ref2 = jnp.maximum(x2 @ w1 + b1, 0.0) @ w2 + b2
    state_feat2 = jax.block_until_ready(
        state_encoder_forward(x2, w1, b1, w2, b2, tile_b=16)
    )
    assert state_feat2.shape == (B2, OUT)
    assert jnp.allclose(state_feat2, ref2, atol=1e-5, rtol=1e-5)

    print("KERNEL_OK")
</pallas_src>

<mosaic_0001>
module attributes {stable_mosaic.version = 11 : i64} {
  func.func @state_encoder_kernel(%arg0: i32, %arg1: memref<16x32xf32, #tpu.memory_space<vmem>>, %arg2: memref<32x64xf32, #tpu.memory_space<vmem>>, %arg3: memref<1x64xf32, #tpu.memory_space<vmem>>, %arg4: memref<64x64xf32, #tpu.memory_space<vmem>>, %arg5: memref<1x64xf32, #tpu.memory_space<vmem>>, %arg6: memref<16x64xf32, #tpu.memory_space<vmem>>) attributes {dimension_semantics = [#tpu.dimension_semantics<parallel>], iteration_bounds = array<i64: 1>, scalar_prefetch = 0 : i64, scratch_operands = 0 : i64, tpu.core_type = #tpu.core_type<tc>, window_params = [{transform_indices = @transform_0, window_bounds = array<i64: 16, 32>}, {pipeline_mode = #tpu.pipeline_mode<synchronous>, transform_indices = @transform_1, window_bounds = array<i64: 32, 64>}, {pipeline_mode = #tpu.pipeline_mode<synchronous>, transform_indices = @transform_2, window_bounds = array<i64: 1, 64>}, {pipeline_mode = #tpu.pipeline_mode<synchronous>, transform_indices = @transform_3, window_bounds = array<i64: 64, 64>}, {pipeline_mode = #tpu.pipeline_mode<synchronous>, transform_indices = @transform_4, window_bounds = array<i64: 1, 64>}, {transform_indices = @transform_5, window_bounds = array<i64: 16, 64>}]} {
    %c0 = arith.constant 0 : index
    %c0_0 = arith.constant 0 : index
    %0 = vector.load %arg1[%c0, %c0_0] : memref<16x32xf32, #tpu.memory_space<vmem>>, vector<16x32xf32>
    %c0_1 = arith.constant 0 : index
    %c0_2 = arith.constant 0 : index
    %1 = vector.load %arg2[%c0_1, %c0_2] : memref<32x64xf32, #tpu.memory_space<vmem>>, vector<32x64xf32>
    %cst = arith.constant dense<0.000000e+00> : vector<16x64xf32>
    %2 = tpu.matmul %0, %1, %cst {dimension_numbers = #tpu.dot_dimension_numbers<[1], [0], [0], [1], [0, 0, 1, 1], [], []>} : vector<16x32xf32>, vector<32x64xf32>, vector<16x64xf32> -> vector<16x64xf32>
    %c0_3 = arith.constant 0 : index
    %c0_4 = arith.constant 0 : index
    %3 = vector.load %arg3[%c0_3, %c0_4] : memref<1x64xf32, #tpu.memory_space<vmem>>, vector<1x64xf32>
    %4 = vector.broadcast %3 : vector<1x64xf32> to vector<16x64xf32>
    %5 = arith.addf %2, %4 : vector<16x64xf32>
    %cst_5 = arith.constant 0.000000e+00 : f32
    %6 = vector.broadcast %cst_5 : f32 to vector<16x64xf32>
    %7 = arith.maximumf %5, %6 : vector<16x64xf32>
    %c0_6 = arith.constant 0 : index
    %c0_7 = arith.constant 0 : index
    %8 = vector.load %arg4[%c0_6, %c0_7] : memref<64x64xf32, #tpu.memory_space<vmem>>, vector<64x64xf32>
    %cst_8 = arith.constant dense<0.000000e+00> : vector<16x64xf32>
    %9 = tpu.matmul %7, %8, %cst_8 {dimension_numbers = #tpu.dot_dimension_numbers<[1], [0], [0], [1], [0, 0, 1, 1], [], []>} : vector<16x64xf32>, vector<64x64xf32>, vector<16x64xf32> -> vector<16x64xf32>
    %c0_9 = arith.constant 0 : index
    %c0_10 = arith.constant 0 : index
    %10 = vector.load %arg5[%c0_9, %c0_10] : memref<1x64xf32, #tpu.memory_space<vmem>>, vector<1x64xf32>
    %11 = vector.broadcast %10 : vector<1x64xf32> to vector<16x64xf32>
    %12 = arith.addf %9, %11 : vector<16x64xf32>
    %c0_11 = arith.constant 0 : index
    %c0_12 = arith.constant 0 : index
    %13 = vector.load %arg6[%c0_11, %c0_12] : memref<16x64xf32, #tpu.memory_space<vmem>>, vector<16x64xf32>
    tpu.vector_store %arg6[%c0_11, %c0_12], %12 {strides = array<i32>} : memref<16x64xf32, #tpu.memory_space<vmem>>, vector<16x64xf32>,
    return
  }
  func.func @transform_0(%arg0: i32) -> (i32, i32) {
    %c0_i32 = arith.constant 0 : i32
    %c0_i32_0 = arith.constant 0 : i32
    return %arg0, %c0_i32 : i32, i32
  }
  func.func @transform_1(%arg0: i32) -> (i32, i32) {
    %c0_i32 = arith.constant 0 : i32
    %c0_i32_0 = arith.constant 0 : i32
    %c0_i32_1 = arith.constant 0 : i32
    return %c0_i32, %c0_i32_0 : i32, i32
  }
  func.func @transform_2(%arg0: i32) -> (i32, i32) {
    %c0_i32 = arith.constant 0 : i32
    %c0_i32_0 = arith.constant 0 : i32
    %c0_i32_1 = arith.constant 0 : i32
    return %c0_i32, %c0_i32_0 : i32, i32
  }
  func.func @transform_3(%arg0: i32) -> (i32, i32) {
    %c0_i32 = arith.constant 0 : i32
    %c0_i32_0 = arith.constant 0 : i32
    %c0_i32_1 = arith.constant 0 : i32
    return %c0_i32, %c0_i32_0 : i32, i32
  }
  func.func @transform_4(%arg0: i32) -> (i32, i32) {
    %c0_i32 = arith.constant 0 : i32
    %c0_i32_0 = arith.constant 0 : i32
    %c0_i32_1 = arith.constant 0 : i32
    return %c0_i32, %c0_i32_0 : i32, i32
  }
  func.func @transform_5(%arg0: i32) -> (i32, i32) {
    %c0_i32 = arith.constant 0 : i32
    %c0_i32_0 = arith.constant 0 : i32
    return %arg0, %c0_i32 : i32, i32
  }
}

</mosaic_0001>

<llo_original>
// kernel: tpu_custom_call.1
$region0: #{tpu_custom_call.1}
  #allocation0 [shape = 'u32[]', space=smem, size = 0x4, offset = 0x4, fixed_abs, tag = 'smem constant byte address 0x4 - core index']
  #allocation1 [shape = 'u32[72,128]{1,0:T(1,128)}', space=vmem, size = 0x9000, scoped, tag = 'internal scratch']
  %s0 = inlined_call_operand.hbm [shape: f32[16,32], index: 0, kind: input, shape index: {}]
  %s1 = inlined_call_operand.hbm [shape: f32[32,64], index: 1, kind: input, shape index: {}]
  %s2 = inlined_call_operand.vmem [shape: f32[1,64], index: 2, kind: input, shape index: {}]
  %s3 = inlined_call_operand.hbm [shape: f32[64,64], index: 3, kind: input, shape index: {}]
  %s4 = inlined_call_operand.vmem [shape: f32[1,64], index: 4, kind: input, shape index: {}]
  %s5 = inlined_call_operand.hbm [shape: f32[16,64], index: 5, kind: output, shape index: {}]
  %s6 = sld [smem:[#allocation0]]
  $region42: #{tpu_custom_call.1} parent=0
    _
  %s8 = ssub.s32 1, %s6
  %s9 = scalar_select 0, %s8, %s6
  $region1: #{tpu_custom_call.1} parent=0
    #allocation2 [shape = 'u8[8192]{0}', space=vmem, size = 0x2000, scoped, tag = 'input window, operand 0, single buffered']
    #allocation3 [shape = 's32[1]{0}', space=sflag, size = 0x4, scoped, tag = 'scoped memory for tpu_custom_call.1']
    #allocation4 [shape = 's32[1]{0}', space=sflag, size = 0x4, scoped, tag = 'scoped memory for tpu_custom_call.1']
    #allocation5 [shape = 'u8[16384]{0}', space=vmem, size = 0x4000, scoped, tag = 'input window, operand 1, single buffered']
    #allocation6 [shape = 's32[1]{0}', space=sflag, size = 0x4, scoped, tag = 'scoped memory for tpu_custom_call.1']
    #allocation7 [shape = 'u8[32768]{0}', space=vmem, size = 0x8000, scoped, tag = 'input window, operand 3, single buffered']
    #allocation8 [shape = 'u8[8192]{0}', space=vmem, size = 0x2000, scoped, tag = 'output window, operand 0, single buffered']
    %10 = vsyncpa [#allocation3], 0
    %11 = vsyncpa [#allocation6], 0
    %12 = vsyncpa [#allocation4], 0
    // Predicated region
    $region2: #{tpu_custom_call.1} parent=1 // pred_check
      _
    $region3: #{tpu_custom_call.1} parent=1 // pred_check_branch
      %14 = sbr.rel (0) target = $region5
    $region4: #{tpu_custom_call.1} parent=1 // pred_region
      %16 = vsyncadd [#allocation3], 0
      %s17 = sshll.u32 %s0, 4
      %s18 = int_to_ptr.hbm [resolvable:$true] %s17
      %s19 = sshll.u32 [#allocation2], 4
      %s20 = int_to_ptr.vmem [resolvable:$true] %s19
      %25 = dma.hbm_to_vmem [thread:$0]  %s18, 256, %s20, [#allocation3], 128, 128, 8
    $region5: #{tpu_custom_call.1} parent=1 // pred_fallthru
      _
    // Predicated region
    $region6: #{tpu_custom_call.1} parent=1 // pred_check
      _
    $region7: #{tpu_custom_call.1} parent=1 // pred_check_branch
      %27 = sbr.rel (0) target = $region9
    $region8: #{tpu_custom_call.1} parent=1 // pred_region
      %29 = vsyncadd [#allocation6], 0
      %s30 = sshll.u32 %s1, 4
      %s31 = int_to_ptr.hbm [resolvable:$true] %s30
      %s32 = sshll.u32 [#allocation5], 4
      %s33 = int_to_ptr.vmem [resolvable:$true] %s32
      %38 = dma.hbm_to_vmem [thread:$0]  %s31, 512, %s33, [#allocation6], 128, 128, 8
    $region9: #{tpu_custom_call.1} parent=1 // pred_fallthru
      _
    // Predicated region
    $region10: #{tpu_custom_call.1} parent=1 // pred_check
      _
    $region11: #{tpu_custom_call.1} parent=1 // pred_check_branch
      %40 = sbr.rel (0) target = $region13
    $region12: #{tpu_custom_call.1} parent=1 // pred_region
      _
    $region13: #{tpu_custom_call.1} parent=1 // pred_fallthru
      _
    // Predicated region
    $region14: #{tpu_custom_call.1} parent=1 // pred_check
      _
    $region15: #{tpu_custom_call.1} parent=1 // pred_check_branch
      %42 = sbr.rel (0) target = $region17
    $region16: #{tpu_custom_call.1} parent=1 // pred_region
      %44 = vsyncadd [#allocation6], 0
      %s45 = sshll.u32 %s3, 4
      %s46 = int_to_ptr.hbm [resolvable:$true] %s45
      %s47 = sshll.u32 [#allocation7], 4
      %s48 = int_to_ptr.vmem [resolvable:$true] %s47
      %53 = dma.hbm_to_vmem [thread:$0]  %s46, 1024, %s48, [#allocation6], 128, 128, 8
    $region17: #{tpu_custom_call.1} parent=1 // pred_fallthru
      _
    // Predicated region
    $region18: #{tpu_custom_call.1} parent=1 // pred_check
      _
    $region19: #{tpu_custom_call.1} parent=1 // pred_check_branch
      %55 = sbr.rel (0) target = $region21
    $region20: #{tpu_custom_call.1} parent=1 // pred_region
      _
    $region21: #{tpu_custom_call.1} parent=1 // pred_fallthru
      _
    // Predicated region
    $region22: #{tpu_custom_call.1} parent=1 // pred_check
      _
    $region23: #{tpu_custom_call.1} parent=1 // pred_check_branch
      %57 = sbr.rel (0) target = $region25
    $region24: #{tpu_custom_call.1} parent=1 // pred_region
      %59 = dma.done [#allocation3], 256
    $region25: #{tpu_custom_call.1} parent=1 // pred_fallthru
      _
    // Predicated region
    $region26: #{tpu_custom_call.1} parent=1 // pred_check
      _
    $region27: #{tpu_custom_call.1} parent=1 // pred_check_branch
      %61 = sbr.rel (0) target = $region29
    $region28: #{tpu_custom_call.1} parent=1 // pred_region
      %63 = dma.done [#allocation6], 512
    $region29: #{tpu_custom_call.1} parent=1 // pred_fallthru
      _
    // Predicated region
    $region30: #{tpu_custom_call.1} parent=1 // pred_check
      _
    $region31: #{tpu_custom_call.1} parent=1 // pred_check_branch
      %65 = sbr.rel (0) target = $region33
    $region32: #{tpu_custom_call.1} parent=1 // pred_region
      %67 = dma.done [#allocation6], 1024
    $region33: #{tpu_custom_call.1} parent=1 // pred_fallthru
      _
    %v68 = vld [vmem:[#allocation2] sm:$0xff]
    %v69 = vld [vmem:[#allocation2 + $0x8] sm:$0xff]
    %v70 = vld [vmem:[#allocation5] sm:$0xff]
    %v71 = vld [vmem:[#allocation5 + $0x8] sm:$0xff]
    %v72 = vld [vmem:[#allocation5 + $0x10] sm:$0xff]
    %v73 = vld [vmem:[#allocation5 + $0x18] sm:$0xff]
    %v74 = vld [vmem:[%s2] sm:$0x1]
    %v76 = vperm.slane %v74, 0
    %vm78 = vcmask 261120
    %v80 = vsel %vm78, %v68, 0
    %v83 = vsel %vm78, %v69, 0
    %85 = vmatpush.msra.mxu0 0.0
    %86 = vmatpush.msra.mxu0 0.0
    %87 = vmatpush.msra.mxu0 0.0
    %88 = vmatpush.msra.mxu0 0.0
    %89 = vmatpush.msra.mxu0 0.0
    %90 = vmatpush.msra.mxu0 0.0
    %91 = vmatpush.msra.mxu0 0.0
    %92 = vmatpush.msra.mxu0 0.0
    %93 = vmatpush.msra.mxu0 0.0
    %94 = vmatpush.msra.mxu0 0.0
    %95 = vmatpush.msra.mxu0 0.0
    %96 = vmatpush.msra.mxu0 0.0
    %97 = vmatpush.msra.mxu0 %v73
    %98 = vmatpush.msra.mxu0 %v72
    %99 = vmatpush.msra.mxu0 %v71
    %100 = vmatpush.msra.mxu0 %v70
    %101 = vmatmul.f32.gmra.mxu0 %v80
    %v102 = vpop.f32.mrf.mxu0
    %v103 = vadd.f32 %v76, %v102
    %104 = vmatmul.f32.gmra.mxu0 %v83
    %v105 = vpop.f32.mrf.mxu0
    %v106 = vadd.f32 %v76, %v105
    %107 = vdwg.mxu0
    %v108 = vmax.f32 %v103, 0.0
    %v109 = vmax.f32 %v106, 0.0
    %v110 = vld [vmem:[#allocation7] sm:$0xff]
    %v111 = vld [vmem:[#allocation7 + $0x8] sm:$0xff]
    %v112 = vld [vmem:[#allocation7 + $0x10] sm:$0xff]
    %v113 = vld [vmem:[#allocation7 + $0x18] sm:$0xff]
    %v114 = vld [vmem:[#allocation7 + $0x20] sm:$0xff]
    %v115 = vld [vmem:[#allocation7 + $0x28] sm:$0xff]
    %v116 = vld [vmem:[#allocation7 + $0x30] sm:$0xff]
    %v117 = vld [vmem:[#allocation7 + $0x38] sm:$0xff]
    %v118 = vld [vmem:[%s4] sm:$0x1]
    %v120 = vperm.slane %v118, 0
    %vm122 = vcmask 523264
    %v124 = vsel %vm122, %v108, 0
    %v127 = vsel %vm122, %v109, 0
    %129 = vmatpush.msra.mxu0 0.0
    %130 = vmatpush.msra.mxu0 0.0
    %131 = vmatpush.msra.mxu0 0.0
    %132 = vmatpush.msra.mxu0 0.0
    %133 = vmatpush.msra.mxu0 0.0
    %134 = vmatpush.msra.mxu0 0.0
    %135 = vmatpush.msra.mxu0 0.0
    %136 = vmatpush.msra.mxu0 0.0
    %137 = vmatpush.msra.mxu0 %v117
    %138 = vmatpush.msra.mxu0 %v116
    %139 = vmatpush.msra.mxu0 %v115
    %140 = vmatpush.msra.mxu0 %v114
    %141 = vmatpush.msra.mxu0 %v113
    %142 = vmatpush.msra.mxu0 %v112
    %143 = vmatpush.msra.mxu0 %v111
    %144 = vmatpush.msra.mxu0 %v110
    %145 = vmatmul.f32.gmra.mxu0 %v124
    %v146 = vpop.f32.mrf.mxu0
    %v147 = vadd.f32 %v120, %v146
    %148 = vmatmul.f32.gmra.mxu0 %v127
    %v149 = vpop.f32.mrf.mxu0
    %v150 = vadd.f32 %v120, %v149
    %151 = vdwg.mxu0
    %152 = vst.msk [vmem:[#allocation8] sm:$0xff] %vm122, %v147
    %153 = vst.msk [vmem:[#allocation8 + $0x8] sm:$0xff] %vm122, %v150
    // Predicated region
    $region34: #{tpu_custom_call.1} parent=1 // pred_check
      _
    $region35: #{tpu_custom_call.1} parent=1 // pred_check_branch
      %155 = sbr.rel (0) target = $region37
    $region36: #{tpu_custom_call.1} parent=1 // pred_region
      %157 = vsyncadd [#allocation4], 0
      %s158 = sshll.u32 [#allocation8], 4
      %s159 = int_to_ptr.vmem [resolvable:$true] %s158
      %s160 = sshll.u32 %s5, 4
      %s161 = int_to_ptr.hbm [resolvable:$true] %s160
      %166 = dma.vmem_to_hbm [thread:$0]  %s159, 256, %s161, [#allocation4], 128, 128, 8
    $region37: #{tpu_custom_call.1} parent=1 // pred_fallthru
      _
    // Predicated region
    $region38: #{tpu_custom_call.1} parent=1 // pred_check
      _
    $region39: #{tpu_custom_call.1} parent=1 // pred_check_branch
      %168 = sbr.rel (0) target = $region41
    $region40: #{tpu_custom_call.1} parent=1 // pred_region
      %170 = dma.done [#allocation4], 256
    $region41: #{tpu_custom_call.1} parent=1 // pred_fallthru
      _
    %171 = vsyncpa [#allocation3], 1
    %172 = vsyncpa [#allocation6], 1
    %173 = vsyncpa [#allocation4], 1

</llo_original>
